<compile_context>
chip_gen: v5e
topology: v5e:2x2
jax: 0.10.0
libtpu: 0.0.40
codegen_flags: <defaults>
</compile_context>

<pallas_src>
import jax
import jax.numpy as jnp
from jax.experimental import pallas as pl
from jax.experimental.pallas import tpu as pltpu


def _round_up(x, m):
    return ((x + m - 1) // m) * m


def _pad_to(x, target_shape):
    widths = [(0, t - s) for s, t in zip(x.shape, target_shape)]
    if all(w == (0, 0) for w in widths):
        return x
    return jnp.pad(x, widths)


def _tpu_vmem_capacity_bytes():
    """Per-core VMEM capacity; conservative fallback if the query fails."""
    try:
        return int(pltpu.get_tpu_info().vmem_capacity_bytes)
    except Exception:
        return 64 << 20          # assume v7x-like (smallest) if unknown


def _footprint_bytes(bb, tt, s_src, h_p, in_item, out_item):
    """Per-grid-step VMEM footprint estimate."""
    # DMA'd blocks, double-buffered by the BlockSpec pipeline.
    blocks = bb * (s_src * h_p * in_item        # h_src block
                   + tt * h_p * in_item         # query block
                   + s_src * 4                  # mask-bias block (f32)
                   + tt * h_p * out_item)       # output block
    blocks *= 2
    # In-kernel temporaries: ~3 live f32 copies of the scores/exp slab + f32 ctx.
    inter = bb * (3 * tt * s_src * 4 + tt * h_p * 4)
    return blocks + inter


def _choose_batch_block(B, tt, s_src, h_p, in_item, out_item, budget,
                        need_two_programs, n_t_tiles):
    """Pick how many batch elements to process per grid step.

    Target ~512 query rows per step (fills the MXU, amortizes the ~0.35us
    per-grid-step overhead), shrink until the double-buffered blocks plus the
    scores intermediates fit the chip-specific VMEM budget, and on 2-TC chips
    keep at least two grid programs alive.
    """
    bb = min(B, max(1, -(-512 // tt)))
    while bb > 1 and _footprint_bytes(bb, tt, s_src, h_p, in_item, out_item) > budget:
        bb -= 1
    if need_two_programs and n_t_tiles == 1 and B > 1:
        bb = min(bb, -(-B // 2))          # >= 2 grid programs for 2 TensorCores
    return max(1, bb)


def _attention_kernel(bias_ref, q_ref, src_ref, out_ref):
    q = q_ref[...]          # (BB, TT, Hp)     compute dtype (bf16 default)
    src = src_ref[...]      # (BB, S_src, Hp)  compute dtype
    bias = bias_ref[...]    # (BB, 1, S_src)   f32 additive mask (0 / -1e30)

    # scores[b, t, s] = sum_h q[b, t, h] * src[b, s, h]
    # Trailing-axis contraction (same pattern as the reference flash kernel);
    # f32 accumulation on the MXU.
    scores = jax.lax.dot_general(
        q, src,
        dimension_numbers=(((2,), (2,)), ((0,), (0,))),
        preferred_element_type=jnp.float32)            # (BB, TT, S_src) f32
    scores = scores + bias                             # mask (broadcast over t)

    # Softmax over S_src -- all elementwise math in f32 (v5e-safe).
    m = jnp.max(scores, axis=-1, keepdims=True)
    e = jnp.exp(scores - m)                            # (BB, TT, S_src) f32
    denom = jnp.sum(e, axis=-1, keepdims=True)         # (BB, TT, 1)

    # Unnormalized PV matmul with bf16 numerator, f32 accumulation.
    ctx = jax.lax.dot_general(
        e.astype(src.dtype), src,
        dimension_numbers=(((2,), (1,)), ((0,), (0,))),
        preferred_element_type=jnp.float32)            # (BB, TT, Hp) f32

    # Normalize the small (TT, Hp) result instead of the (TT, S_src) slab.
    inv = pl.reciprocal(denom, approx=True)            # EUP vrcp (free slot)
    inv = inv * (2.0 - denom * inv)                    # one Newton step -> ~f32 exact
    out_ref[...] = (ctx * inv).astype(out_ref.dtype)


def attention_pallas(h_src, h_t_tgt, weight, mask=None,
                     compute_dtype=jnp.bfloat16):
    """Pallas equivalent of Attention.forward.

    h_src:   (B, S_src, H)
    h_t_tgt: (B, S_tgt, H)
    weight:  (H, H)  -- nn.Linear weight (output = x @ weight.T)
    mask:    optional (B, S_src) bool/int -- True/1 at positions to mask out
    compute_dtype: dtype of the in-kernel MXU operands (default bf16);
                   accumulation and softmax stay f32.
    returns: (B, S_tgt, H) in h_src.dtype
    """
    B, S_src, H = h_src.shape
    _, S_tgt, _ = h_t_tgt.shape
    out_dtype = h_src.dtype
    if compute_dtype is None:
        compute_dtype = h_src.dtype

    # ---- hoisted linear projection: one big MXU matmul, native dtype --------
    query = jnp.einsum("bth,oh->bto", h_t_tgt, weight,
                       preferred_element_type=jnp.float32)          # (B, S_tgt, H) f32

    # ---- additive mask bias (finite, so no -inf -> NaN rows) -----------------
    if mask is None:
        bias = jnp.zeros((B, 1, S_src), dtype=jnp.float32)
    else:
        bias = jnp.where(mask.reshape(B, S_src).astype(bool),
                         jnp.float32(-1e30), jnp.float32(0.0))
        bias = bias.reshape(B, 1, S_src).astype(jnp.float32)

    # ---- tiling --------------------------------------------------------------
    H_p = _round_up(H, 128)                       # lane-dense blocks / unmasked vst
    TT = _round_up(S_tgt, 8) if S_tgt <= 512 else 256
    S_tgt_p = _round_up(S_tgt, TT)
    n_t_tiles = S_tgt_p // TT

    in_item = jnp.dtype(compute_dtype).itemsize
    out_item = jnp.dtype(out_dtype).itemsize

    vmem_cap = _tpu_vmem_capacity_bytes()
    small_vmem = vmem_cap < (128 << 20)           # v7x-like: 64 MiB/TC, 2 TCs/chip
    budget = (16 << 20) if small_vmem else (32 << 20)

    BB = _choose_batch_block(B, TT, S_src, H_p, in_item, out_item, budget,
                             need_two_programs=small_vmem, n_t_tiles=n_t_tiles)
    B_p = _round_up(B, BB)

    footprint = _footprint_bytes(BB, TT, S_src, H_p, in_item, out_item)
    vmem_limit = int(min(vmem_cap * 3 // 4, max(2 * footprint, 32 << 20)))

    query_p = _pad_to(query.astype(compute_dtype), (B_p, S_tgt_p, H_p))
    src_p = _pad_to(h_src.astype(compute_dtype), (B_p, S_src, H_p))
    bias_p = _pad_to(bias, (B_p, 1, S_src))

    # b outer, t inner: the (BB, S_src, Hp) src block stays resident across all
    # S_tgt tiles of a batch block (no re-DMA of h_src per S_tgt tile).
    grid = (B_p // BB, S_tgt_p // TT)

    out = pl.pallas_call(
        _attention_kernel,
        out_shape=jax.ShapeDtypeStruct((B_p, S_tgt_p, H_p), out_dtype),
        grid_spec=pltpu.PrefetchScalarGridSpec(
            num_scalar_prefetch=0,
            grid=grid,
            in_specs=[
                pl.BlockSpec((BB, 1, S_src), lambda b, t: (b, 0, 0)),     # mask bias
                pl.BlockSpec((BB, TT, H_p), lambda b, t: (b, t, 0)),      # query
                pl.BlockSpec((BB, S_src, H_p), lambda b, t: (b, 0, 0)),   # h_src
            ],
            out_specs=pl.BlockSpec((BB, TT, H_p), lambda b, t: (b, t, 0)),
        ),
        compiler_params=pltpu.CompilerParams(
            dimension_semantics=("parallel", "parallel"),
            vmem_limit_bytes=vmem_limit),
    )(bias_p, query_p, src_p)

    return out[:B, :S_tgt, :H]                     # already in out_dtype


def attention_ref(h_src, h_t_tgt, weight, mask=None):
    """Pure-JAX reference mirroring the PyTorch forward exactly."""
    query = jnp.einsum("bth,oh->bto", h_t_tgt, weight)
    scores = jnp.einsum("bth,bsh->bts", query, h_src)
    if mask is not None:
        scores = jnp.where(mask[:, None, :].astype(bool), -jnp.inf, scores)
    attn = jax.nn.softmax(scores, axis=-1)
    return jnp.einsum("bts,bsh->bth", attn, h_src)


if __name__ == "__main__":
    # Small deterministic example shapes.
    B, S_src, S_tgt, H = 2, 16, 8, 32

    key = jax.random.PRNGKey(0)
    k1, k2, k3 = jax.random.split(key, 3)

    h_src = jax.random.normal(k1, (B, S_src, H), dtype=jnp.float32)
    h_t_tgt = jax.random.normal(k2, (B, S_tgt, H), dtype=jnp.float32)
    # nn.Linear(hidden, hidden, bias=False) weight, deterministic init.
    weight = (jax.random.uniform(k3, (H, H), dtype=jnp.float32) - 0.5) * (2.0 / (H ** 0.5))

    # Mask like pack/pad_packed lengths: batch 0 sees all src steps,
    # batch 1 has its last 4 source positions masked out.
    lengths = jnp.array([S_src, S_src - 4], dtype=jnp.int32)
    mask = jnp.arange(S_src)[None, :] >= lengths[:, None]       # (B, S_src) bool

    ref = attention_ref(h_src, h_t_tgt, weight, mask)

    # Default fast path: bf16 MXU operands, f32 accumulation & softmax.
    out_fast = jax.block_until_ready(attention_pallas(h_src, h_t_tgt, weight, mask))
    assert out_fast.shape == (B, S_tgt, H)
    assert out_fast.dtype == h_src.dtype
    assert jnp.allclose(out_fast, ref, atol=1e-1, rtol=1e-1), "bf16-path mismatch vs reference"

    # Full-precision path for a tight numerical check of the kernel structure.
    out_f32 = jax.block_until_ready(
        attention_pallas(h_src, h_t_tgt, weight, mask, compute_dtype=jnp.float32))
    assert jnp.allclose(out_f32, ref, atol=2e-5, rtol=2e-5), "f32-path mismatch vs reference"

    print("KERNEL_OK")
</pallas_src>

<mosaic_0001>
module attributes {stable_mosaic.version = 11 : i64} {
  func.func @_attention_kernel(%arg0: i32, %arg1: i32, %arg2: memref<1x1x16xf32, #tpu.memory_space<vmem>>, %arg3: memref<1x8x128xbf16, #tpu.memory_space<vmem>>, %arg4: memref<1x16x128xbf16, #tpu.memory_space<vmem>>, %arg5: memref<1x8x128xf32, #tpu.memory_space<vmem>>) attributes {dimension_semantics = [#tpu.dimension_semantics<parallel>, #tpu.dimension_semantics<parallel>], iteration_bounds = array<i64: 2, 1>, scalar_prefetch = 0 : i64, scratch_operands = 0 : i64, tpu.core_type = #tpu.core_type<tc>, window_params = [{transform_indices = @transform_0, window_bounds = array<i64: 1, 1, 16>}, {transform_indices = @transform_1, window_bounds = array<i64: 1, 8, 128>}, {transform_indices = @transform_2, window_bounds = array<i64: 1, 16, 128>}, {transform_indices = @transform_3, window_bounds = array<i64: 1, 8, 128>}]} {
    %c0 = arith.constant 0 : index
    %c0_0 = arith.constant 0 : index
    %c0_1 = arith.constant 0 : index
    %0 = vector.load %arg3[%c0, %c0_0, %c0_1] : memref<1x8x128xbf16, #tpu.memory_space<vmem>>, vector<1x8x128xbf16>
    %c0_2 = arith.constant 0 : index
    %c0_3 = arith.constant 0 : index
    %c0_4 = arith.constant 0 : index
    %1 = vector.load %arg4[%c0_2, %c0_3, %c0_4] : memref<1x16x128xbf16, #tpu.memory_space<vmem>>, vector<1x16x128xbf16>
    %c0_5 = arith.constant 0 : index
    %c0_6 = arith.constant 0 : index
    %c0_7 = arith.constant 0 : index
    %2 = vector.load %arg2[%c0_5, %c0_6, %c0_7] : memref<1x1x16xf32, #tpu.memory_space<vmem>>, vector<1x1x16xf32>
    %cst = arith.constant dense<0.000000e+00> : vector<1x8x16xf32>
    %3 = tpu.matmul %0, %1, %cst {dimension_numbers = #tpu.dot_dimension_numbers<[2], [2], [1], [1], [0, 0, 0, 1, 1, 1], [0], [0]>} : vector<1x8x128xbf16>, vector<1x16x128xbf16>, vector<1x8x16xf32> -> vector<1x8x16xf32>
    %4 = vector.broadcast %2 : vector<1x1x16xf32> to vector<1x8x16xf32>
    %5 = arith.addf %3, %4 : vector<1x8x16xf32>
    %cst_8 = arith.constant dense<0xFF800000> : vector<1x8xf32>
    %6 = vector.multi_reduction <maximumf>, %5, %cst_8 [2] : vector<1x8x16xf32> to vector<1x8xf32>
    %7 = vector.shape_cast %6 : vector<1x8xf32> to vector<1x8x1xf32>
    %8 = vector.broadcast %7 : vector<1x8x1xf32> to vector<1x8x16xf32>
    %9 = arith.subf %5, %8 : vector<1x8x16xf32>
    %10 = math.exp %9 : vector<1x8x16xf32>
    %cst_9 = arith.constant dense<0.000000e+00> : vector<1x8xf32>
    %11 = vector.multi_reduction <add>, %10, %cst_9 [2] : vector<1x8x16xf32> to vector<1x8xf32>
    %12 = vector.shape_cast %11 : vector<1x8xf32> to vector<1x8x1xf32>
    %13 = arith.truncf %10 : vector<1x8x16xf32> to vector<1x8x16xbf16>
    %cst_10 = arith.constant dense<0.000000e+00> : vector<1x8x128xf32>
    %14 = tpu.matmul %13, %1, %cst_10 {dimension_numbers = #tpu.dot_dimension_numbers<[2], [1], [1], [2], [0, 0, 0, 1, 1, 2], [0], [0]>} : vector<1x8x16xbf16>, vector<1x16x128xbf16>, vector<1x8x128xf32> -> vector<1x8x128xf32>
    %15 = tpu.reciprocal %12 {approx = true} : vector<1x8x1xf32> -> vector<1x8x1xf32>
    %16 = arith.mulf %12, %15 : vector<1x8x1xf32>
    %cst_11 = arith.constant 2.000000e+00 : f32
    %17 = vector.broadcast %cst_11 : f32 to vector<1x8x1xf32>
    %18 = arith.subf %17, %16 : vector<1x8x1xf32>
    %19 = arith.mulf %15, %18 : vector<1x8x1xf32>
    %20 = vector.broadcast %19 : vector<1x8x1xf32> to vector<1x8x128xf32>
    %21 = arith.mulf %14, %20 : vector<1x8x128xf32>
    %c0_12 = arith.constant 0 : index
    %c0_13 = arith.constant 0 : index
    %c0_14 = arith.constant 0 : index
    %22 = vector.load %arg5[%c0_12, %c0_13, %c0_14] : memref<1x8x128xf32, #tpu.memory_space<vmem>>, vector<1x8x128xf32>
    tpu.vector_store %arg5[%c0_12, %c0_13, %c0_14], %21 {strides = array<i32>} : memref<1x8x128xf32, #tpu.memory_space<vmem>>, vector<1x8x128xf32>,
    return
  }
  func.func @transform_0(%arg0: i32, %arg1: i32) -> (i32, i32, i32) {
    %c0_i32 = arith.constant 0 : i32
    %c0_i32_0 = arith.constant 0 : i32
    %c0_i32_1 = arith.constant 0 : i32
    return %arg0, %c0_i32, %c0_i32_0 : i32, i32, i32
  }
  func.func @transform_1(%arg0: i32, %arg1: i32) -> (i32, i32, i32) {
    %c0_i32 = arith.constant 0 : i32
    %c0_i32_0 = arith.constant 0 : i32
    return %arg0, %arg1, %c0_i32 : i32, i32, i32
  }
  func.func @transform_2(%arg0: i32, %arg1: i32) -> (i32, i32, i32) {
    %c0_i32 = arith.constant 0 : i32
    %c0_i32_0 = arith.constant 0 : i32
    %c0_i32_1 = arith.constant 0 : i32
    return %arg0, %c0_i32, %c0_i32_0 : i32, i32, i32
  }
  func.func @transform_3(%arg0: i32, %arg1: i32) -> (i32, i32, i32) {
    %c0_i32 = arith.constant 0 : i32
    %c0_i32_0 = arith.constant 0 : i32
    return %arg0, %arg1, %c0_i32 : i32, i32, i32
  }
}

</mosaic_0001>

<llo_original>
// kernel: tpu_custom_call.1
$region0: #{tpu_custom_call.1}
  #allocation0 [shape = 'u32[]', space=smem, size = 0x4, offset = 0x4, fixed_abs, tag = 'smem constant byte address 0x4 - core index']
  #allocation1 [shape = 'u32[72,128]{1,0:T(1,128)}', space=vmem, size = 0x9000, scoped, tag = 'internal scratch']
  %s0 = inlined_call_operand.hbm [shape: f32[2,1,16], index: 0, kind: input, shape index: {}]
  %s1 = inlined_call_operand.hbm [shape: bf16[2,8,128], index: 1, kind: input, shape index: {}]
  %s2 = inlined_call_operand.hbm [shape: bf16[2,16,128], index: 2, kind: input, shape index: {}]
  %s3 = inlined_call_operand.hbm [shape: f32[2,8,128], index: 3, kind: output, shape index: {}]
  %s4 = sld [smem:[#allocation0]]
  $region57: #{tpu_custom_call.1} parent=0
    _
  %s6 = ssub.s32 1, %s4
  %s7 = scalar_select 0, %s6, %s4
  $region1: #{tpu_custom_call.1} parent=0
    #allocation2 [shape = 'u8[1024]{0}', space=vmem, size = 0x400, scoped, tag = 'input window, operand 0']
    #allocation3 [shape = 's32[2]{0}', space=sflag, size = 0x8, scoped, tag = 'scoped memory for tpu_custom_call.1']
    #allocation4 [shape = 's32[2]{0}', space=sflag, size = 0x8, scoped, tag = 'scoped memory for tpu_custom_call.1']
    #allocation5 [shape = 'u8[4096]{0}', space=vmem, size = 0x1000, scoped, tag = 'input window, operand 1']
    #allocation6 [shape = 's32[2]{0}', space=sflag, size = 0x8, scoped, tag = 'scoped memory for tpu_custom_call.1']
    #allocation7 [shape = 'u8[8192]{0}', space=vmem, size = 0x2000, scoped, tag = 'input window, operand 2']
    #allocation8 [shape = 'u8[8192]{0}', space=vmem, size = 0x2000, scoped, tag = 'output window, operand 0']
    %8 = vsyncpa [#allocation3], 0
    %s9 = scalar_lea.sflag [#allocation3], 1
    %10 = vsyncpa %s9, 0
    %11 = vsyncpa [#allocation6], 0
    %s12 = scalar_lea.sflag [#allocation6], 1
    %13 = vsyncpa %s12, 0
    %14 = vsyncpa [#allocation4], 0
    %s15 = scalar_lea.sflag [#allocation4], 1
    %16 = vsyncpa %s15, 0
    loop: start=0, step=1, limit=4
    $region2: #{tpu_custom_call.1} parent=1 // loop_pre_header
      _
    $region3: #{tpu_custom_call.1} parent=1 // loop_header
      %s18 = sphi 0, %s22
      %p19 = scmp.ge.s32.totalorder %s18, 4
      %s25 = sphi 0, %s37
      %s26 = sphi 0, %s33
      %s27 = sphi 0, %s25
      %s28 = sphi 0, %s26
      %s29 = sphi 0, %s27
      %s30 = sphi 0, %s28
      %s40 = sphi 0, %s42
      %s43 = sphi 0, %s40
      %s44 = sphi 0, %s43
      %s60 = sphi 0, %s44
      %s68 = sphi 0, %s70
      %s71 = sphi 0, %s68
      %s72 = sphi 0, %s71
      %s88 = sphi 0, %s72
      %s94 = sphi 0, %s96
      %s97 = sphi 0, %s94
      %s98 = sphi 0, %s97
      %s114 = sphi 0, %s98
      %s122 = sphi 0, %s124
      %s125 = sphi 0, %s122
      %s126 = sphi 0, %s125
      %s142 = sphi 0, %s126
    $region4: #{tpu_custom_call.1} parent=1 // loop_header_branch
      %21 = sbr.rel (%p19) target = $region8
    $region5: #{tpu_custom_call.1} parent=1 // loop_body
      %s23 = ssub.s32 %s18, 1
      %s24 = ssub.s32 %s18, 2
      %s31 = sadd.s32 1, %s26
      %p32 = scmp.ge.s32.totalorder %s31, 1
      %s33 = scalar_select %p32, 0, %s31
      %s34 = sadd.s32 1, %s25
      %s35 = scalar_select %p32, %s34, %s25
      %p36 = scmp.ge.s32.totalorder %s35, 2
      %s37 = scalar_select %p36, 0, %s35
      %s38 = ssub.s32 %s25, %s37
      %p39 = scmp.eq.s32.totalorder %s38, 0
      %s41 = sadd.s32 %s40, 1
      %s42 = scalar_select %p39, %s40, %s41
      %p45 = pneg %p39
      %p46 = scmp.eq.s32.totalorder %s18, 1
      %p47 = por %p45, %p46
      %p48 = scmp.ne.s32.totalorder %s40, %s43
      %p49 = scmp.eq.s32.totalorder %s18, 0
      %p50 = por %p48, %p49
      %p51 = scmp.ne.s32.totalorder %s40, %s43
      %p52 = scmp.eq.s32.totalorder %s23, 1
      %p53 = por %p51, %p52
      %p54 = scmp.ne.s32.totalorder %s43, %s44
      %p55 = scmp.eq.s32.totalorder %s23, 0
      %p56 = por %p54, %p55
      %p57 = scmp.ne.s32.totalorder %s43, %s44
      %p58 = scmp.eq.s32.totalorder %s24, 1
      %p59 = por %p57, %p58
      %p61 = scmp.ne.s32.totalorder %s44, %s60
      %p62 = scmp.eq.s32.totalorder %s24, 0
      %p63 = por %p61, %p62
      %s64 = ssub.s32 %s25, %s37
      %s65 = ssub.s32 %s26, %s33
      %s66 = sor.u32 %s64, %s65
      %p67 = scmp.eq.s32.totalorder %s66, 0
      %s69 = sadd.s32 %s68, 1
      %s70 = scalar_select %p67, %s68, %s69
      %p73 = pneg %p67
      %p74 = scmp.eq.s32.totalorder %s18, 1
      %p75 = por %p73, %p74
      %p76 = scmp.ne.s32.totalorder %s68, %s71
      %p77 = scmp.eq.s32.totalorder %s18, 0
      %p78 = por %p76, %p77
      %p79 = scmp.ne.s32.totalorder %s68, %s71
      %p80 = scmp.eq.s32.totalorder %s23, 1
      %p81 = por %p79, %p80
      %p82 = scmp.ne.s32.totalorder %s71, %s72
      %p83 = scmp.eq.s32.totalorder %s23, 0
      %p84 = por %p82, %p83
      %p85 = scmp.ne.s32.totalorder %s71, %s72
      %p86 = scmp.eq.s32.totalorder %s24, 1
      %p87 = por %p85, %p86
      %p89 = scmp.ne.s32.totalorder %s72, %s88
      %p90 = scmp.eq.s32.totalorder %s24, 0
      %p91 = por %p89, %p90
      %s92 = ssub.s32 %s25, %s37
      %p93 = scmp.eq.s32.totalorder %s92, 0
      %s95 = sadd.s32 %s94, 1
      %s96 = scalar_select %p93, %s94, %s95
      %p99 = pneg %p93
      %p100 = scmp.eq.s32.totalorder %s18, 1
      %p101 = por %p99, %p100
      %p102 = scmp.ne.s32.totalorder %s94, %s97
      %p103 = scmp.eq.s32.totalorder %s18, 0
      %p104 = por %p102, %p103
      %p105 = scmp.ne.s32.totalorder %s94, %s97
      %p106 = scmp.eq.s32.totalorder %s23, 1
      %p107 = por %p105, %p106
      %p108 = scmp.ne.s32.totalorder %s97, %s98
      %p109 = scmp.eq.s32.totalorder %s23, 0
      %p110 = por %p108, %p109
      %p111 = scmp.ne.s32.totalorder %s97, %s98
      %p112 = scmp.eq.s32.totalorder %s24, 1
      %p113 = por %p111, %p112
      %p115 = scmp.ne.s32.totalorder %s98, %s114
      %p116 = scmp.eq.s32.totalorder %s24, 0
      %p117 = por %p115, %p116
      %s118 = ssub.s32 %s25, %s37
      %s119 = ssub.s32 %s26, %s33
      %s120 = sor.u32 %s118, %s119
      %p121 = scmp.eq.s32.totalorder %s120, 0
      %s123 = sadd.s32 %s122, 1
      %s124 = scalar_select %p121, %s122, %s123
      %p127 = pneg %p121
      %p128 = scmp.eq.s32.totalorder %s18, 1
      %p129 = por %p127, %p128
      %p130 = scmp.ne.s32.totalorder %s122, %s125
      %p131 = scmp.eq.s32.totalorder %s18, 0
      %p132 = por %p130, %p131
      %p133 = scmp.ne.s32.totalorder %s122, %s125
      %p134 = scmp.eq.s32.totalorder %s23, 1
      %p135 = por %p133, %p134
      %p136 = scmp.ne.s32.totalorder %s125, %s126
      %p137 = scmp.eq.s32.totalorder %s23, 0
      %p138 = por %p136, %p137
      %p139 = scmp.ne.s32.totalorder %s125, %s126
      %p140 = scmp.eq.s32.totalorder %s24, 1
      %p141 = por %p139, %p140
      %p143 = scmp.ne.s32.totalorder %s126, %s142
      %p144 = scmp.eq.s32.totalorder %s24, 0
      %p145 = por %p143, %p144
      %p146 = scmp.le.s32.totalorder 1, %s18
      %p147 = scmp.lt.s32.totalorder %s18, 3
      %p148 = pnand %p146, %p147
      %p149 = pneg %p148
      // Predicated region
      $region9: #{tpu_custom_call.1} parent=5 // pred_check
        _
      $region10: #{tpu_custom_call.1} parent=5 // pred_check_branch
        %151 = sbr.rel (%p148) target = $region12
      $region11: #{tpu_custom_call.1} parent=5 // pred_region
        %s152 = ssub.s32 %s18, 1
      $region12: #{tpu_custom_call.1} parent=5 // pred_fallthru
        _
      %p153 = scmp.lt.s32.totalorder %s18, 2
      // Predicated region
      $region13: #{tpu_custom_call.1} parent=5 // pred_check
        %p154 = pneg %p153
      $region14: #{tpu_custom_call.1} parent=5 // pred_check_branch
        %156 = sbr.rel (%p154) target = $region16
      $region15: #{tpu_custom_call.1} parent=5 // pred_region
        // Predicated region
        $region17: #{tpu_custom_call.1} parent=15 // pred_check
          %p157 = pneg %p50
        $region18: #{tpu_custom_call.1} parent=15 // pred_check_branch
          %159 = sbr.rel (%p157) target = $region20
        $region19: #{tpu_custom_call.1} parent=15 // pred_region
          %s160 = sand.u32 %s40, 1
          %s161 = scalar_lea.sflag [#allocation3], %s160
          %s162 = sand.u32 %s40, 1
          %s163 = scalar_lea.vmem [#allocation2], %s162
          %165 = vsyncadd %s161, 0
          %s166 = scalar_lea.hbm %s0, %s25
          %s168 = sshll.u32 %s166, 4
          %s169 = int_to_ptr.hbm [resolvable:$true] %s168
          %s170 = sshll.u32 %s163, 4
          %s171 = int_to_ptr.vmem [resolvable:$true] %s170
          %173 = dma.hbm_to_vmem [thread:$0]  %s169, 16, %s171, %s161
        $region20: #{tpu_custom_call.1} parent=15 // pred_fallthru
          _
        // Predicated region
        $region21: #{tpu_custom_call.1} parent=15 // pred_check
          %p174 = pneg %p78
        $region22: #{tpu_custom_call.1} parent=15 // pred_check_branch
          %176 = sbr.rel (%p174) target = $region24
        $region23: #{tpu_custom_call.1} parent=15 // pred_region
          %s177 = sand.u32 %s18, 1
          %s178 = scalar_lea.sflag [#allocation6], %s177
          %s179 = sand.u32 %s68, 1
          %s180 = smul.addr %s179, 4
          %s181 = scalar_lea.vmem [#allocation5], %s180
          %183 = vsyncadd %s178, 0
          %s184 = sadd.s32 %s26, %s25
          %s185 = smul.addr %s184, 4
          %s186 = scalar_lea.hbm %s1, %s185
          %s188 = sshll.u32 %s186, 4
          %s189 = int_to_ptr.hbm [resolvable:$true] %s188
          %s190 = sshll.u32 %s181, 4
          %s191 = int_to_ptr.vmem [resolvable:$true] %s190
          %193 = dma.hbm_to_vmem [thread:$0]  %s189, 64, %s191, %s178
        $region24: #{tpu_custom_call.1} parent=15 // pred_fallthru
          _
        // Predicated region
        $region25: #{tpu_custom_call.1} parent=15 // pred_check
          %p194 = pneg %p104
        $region26: #{tpu_custom_call.1} parent=15 // pred_check_branch
          %196 = sbr.rel (%p194) target = $region28
        $region27: #{tpu_custom_call.1} parent=15 // pred_region
          %s197 = sand.u32 %s18, 1
          %s198 = scalar_lea.sflag [#allocation6], %s197
          %s199 = sand.u32 %s94, 1
          %s200 = smul.addr %s199, 8
          %s201 = scalar_lea.vmem [#allocation7], %s200
          %203 = vsyncadd %s198, 0
          %s204 = smul.addr %s25, 2
          %s205 = smul.addr %s204, 4
          %s206 = scalar_lea.hbm %s2, %s205
          %s207 = sshll.u32 %s206, 4
          %s208 = int_to_ptr.hbm [resolvable:$true] %s207
          %s209 = sshll.u32 %s201, 4
          %s210 = int_to_ptr.vmem [resolvable:$true] %s209
          %215 = dma.hbm_to_vmem [thread:$0]  %s208, 128, %s210, %s198, 64, 64, 4
        $region28: #{tpu_custom_call.1} parent=15 // pred_fallthru
          _
      $region16: #{tpu_custom_call.1} parent=5 // pred_fallthru
        _
      %p216 = scmp.le.s32.totalorder 1, %s18
      %p217 = scmp.lt.s32.totalorder %s18, 3
      %p218 = pnand %p216, %p217
      %p219 = pneg %p218
      // Predicated region
      $region29: #{tpu_custom_call.1} parent=5 // pred_check
        _
      $region30: #{tpu_custom_call.1} parent=5 // pred_check_branch
        %221 = sbr.rel (%p218) target = $region32
      $region31: #{tpu_custom_call.1} parent=5 // pred_region
        %s222 = ssub.s32 %s18, 1
        %s223 = sand.u32 %s43, 1
        %s224 = scalar_lea.sflag [#allocation3], %s223
        %s225 = sand.u32 %s43, 1
        %s226 = scalar_lea.vmem [#allocation2], %s225
        // Predicated region
        $region33: #{tpu_custom_call.1} parent=31 // pred_check
          %p227 = pneg %p56
        $region34: #{tpu_custom_call.1} parent=31 // pred_check_branch
          %229 = sbr.rel (%p227) target = $region36
        $region35: #{tpu_custom_call.1} parent=31 // pred_region
          %231 = dma.done %s224, 16
        $region36: #{tpu_custom_call.1} parent=31 // pred_fallthru
          _
        %s232 = sand.u32 %s23, 1
        %s233 = scalar_lea.sflag [#allocation6], %s232
        %s234 = sand.u32 %s71, 1
        %s235 = smul.addr %s234, 4
        %s236 = scalar_lea.vmem [#allocation5], %s235
        // Predicated region
        $region37: #{tpu_custom_call.1} parent=31 // pred_check
          %p237 = pneg %p84
        $region38: #{tpu_custom_call.1} parent=31 // pred_check_branch
          %239 = sbr.rel (%p237) target = $region40
        $region39: #{tpu_custom_call.1} parent=31 // pred_region
          %241 = dma.done %s233, 64
        $region40: #{tpu_custom_call.1} parent=31 // pred_fallthru
          _
        %s242 = sand.u32 %s23, 1
        %s243 = scalar_lea.sflag [#allocation6], %s242
        %s244 = sand.u32 %s97, 1
        %s245 = smul.addr %s244, 8
        %s246 = scalar_lea.vmem [#allocation7], %s245
        // Predicated region
        $region41: #{tpu_custom_call.1} parent=31 // pred_check
          %p247 = pneg %p110
        $region42: #{tpu_custom_call.1} parent=31 // pred_check_branch
          %249 = sbr.rel (%p247) target = $region44
        $region43: #{tpu_custom_call.1} parent=31 // pred_region
          %251 = dma.done %s243, 128
        $region44: #{tpu_custom_call.1} parent=31 // pred_fallthru
          _
        %s252 = sand.u32 %s43, 1
        %s253 = scalar_lea.sflag [#allocation3], %s252
        %s254 = sand.u32 %s43, 1
        %s255 = scalar_lea.vmem [#allocation2], %s254
        %p256 = pneg %p56
        %p257 = pneg %p53
        %s258 = sand.u32 %s23, 1
        %s259 = scalar_lea.sflag [#allocation6], %s258
        %s260 = sand.u32 %s71, 1
        %s261 = smul.addr %s260, 4
        %s262 = scalar_lea.vmem [#allocation5], %s261
        %p263 = pneg %p84
        %p264 = pneg %p81
        %s265 = sand.u32 %s23, 1
        %s266 = scalar_lea.sflag [#allocation6], %s265
        %s267 = sand.u32 %s97, 1
        %s268 = smul.addr %s267, 8
        %s269 = scalar_lea.vmem [#allocation7], %s268
        %p270 = pneg %p110
        %p271 = pneg %p107
        %p272 = pneg %p138
        %p273 = pneg %p135
        %s274 = sand.u32 %s125, 1
        %s275 = scalar_lea.sflag [#allocation4], %s274
        %s276 = sand.u32 %s125, 1
        %s277 = smul.addr %s276, 8
        %s278 = scalar_lea.vmem [#allocation8], %s277
        %v280 = vld [vmem:[%s236] sm:$0xf]
        %v281 = vld [vmem:[%s246] sm:$0xf]
        %v282 = vld [vmem:[%s246 + $0x4] sm:$0xf]
        %v283 = vld [vmem:[%s226] sm:$0x1]
        %v285 = vperm.slane %v283, 0
        %v289 = vunpack.c.l.b16 %v281
        %v290 = vunpack.c.l.b16 %v282
        %v291 = vpack.c.b16 %v290, %v289
        %293 = vmatpush.bf16.xpose.msra.mxu0 0
        %294 = vmatpush.bf16.xpose.msra.mxu0 0
        %295 = vmatpush.bf16.xpose.msra.mxu0 0
        %296 = vmatpush.bf16.xpose.msra.mxu0 0
        %297 = vmatpush.bf16.xpose.msra.mxu0 0
        %298 = vmatpush.bf16.xpose.msra.mxu0 0
        %299 = vmatpush.bf16.xpose.msra.mxu0 0
        %300 = vmatpush.bf16.xpose.msra.mxu0 %v291
        %301 = vmatmul.bf16.gmra.mxu0 %v280
        %v302 = vpop.f32.mrf.mxu0
        %v303 = vadd.f32 %v285, %v302
        %v304 = vpop.f32.mrf.mxu0
        %305 = vdwg.mxu0
        %vm306 = vcmask 130048
        %v307 = vsel %vm306, %v303, -inf
        %308 = vmax.xlane.f32.xlu0 %v307
        %v309 = vpop.xlane.xlu0 %308
        %v310 = vsub.f32 %v303, %v309
        %v311 = vmul.f32 %v310, 1.442695
        %v312 = vpow.pop %v311
        %v313 = vsel %vm306, %v312, 0.0
        %314 = vadd.xlane.f32.xlu0 %v313
        %v315 = vpop.xlane.xlu0 %314
        %v316 = vpack.c.bf16 %v312, %v312
        %v318 = vsel %vm306, %v316, 0
        %320 = vmatpush.bf16.msra.mxu0 0
        %321 = vmatpush.bf16.msra.mxu0 0
        %322 = vmatpush.bf16.msra.mxu0 0
        %323 = vmatpush.bf16.msra.mxu0 0
        %324 = vmatpush.bf16.msra.mxu0 0
        %325 = vmatpush.bf16.msra.mxu0 0
        %326 = vmatpush.bf16.msra.mxu0 0
        %327 = vmatpush.bf16.msra.mxu0 %v291
        %328 = vmatmul.bf16.gmra.mxu0 %v318
        %v329 = vpop.f32.mrf.mxu0
        %v330 = vadd.f32 0.0, %v329
        %v331 = vpop.f32.mrf.mxu0
        %332 = vdwg.mxu0
        %v333 = vrcp.pop %v315
        %v334 = vmul.f32 %v315, %v333
        %v335 = vsub.f32 2.0, %v334
        %v336 = vmul.f32 %v333, %v335
        %v337 = vmul.f32 %v330, %v336
        %338 = vst [vmem:[%s278] sm:$0xff] %v337
        %s339 = sand.u32 %s125, 1
        %s340 = scalar_lea.sflag [#allocation4], %s339
        %s341 = sand.u32 %s125, 1
        %s342 = smul.addr %s341, 8
        %s343 = scalar_lea.vmem [#allocation8], %s342
        // Predicated region
        $region45: #{tpu_custom_call.1} parent=31 // pred_check
          %p344 = pneg %p135
        $region46: #{tpu_custom_call.1} parent=31 // pred_check_branch
          %346 = sbr.rel (%p344) target = $region48
        $region47: #{tpu_custom_call.1} parent=31 // pred_region
          %348 = vsyncadd %s340, 0
          %s349 = sadd.s32 %s28, %s27
          %s350 = smul.addr %s349, 8
          %s351 = scalar_lea.hbm %s3, %s350
          %s353 = sshll.u32 %s343, 4
          %s354 = int_to_ptr.vmem [resolvable:$true] %s353
          %s355 = sshll.u32 %s351, 4
          %s356 = int_to_ptr.hbm [resolvable:$true] %s355
          %358 = dma.vmem_to_hbm [thread:$0]  %s354, 128, %s356, %s340
        $region48: #{tpu_custom_call.1} parent=31 // pred_fallthru
          _
      $region32: #{tpu_custom_call.1} parent=5 // pred_fallthru
        _
      %p359 = scmp.le.s32.totalorder 2, %s18
      // Predicated region
      $region49: #{tpu_custom_call.1} parent=5 // pred_check
        %p360 = pneg %p359
      $region50: #{tpu_custom_call.1} parent=5 // pred_check_branch
        %362 = sbr.rel (%p360) target = $region52
      $region51: #{tpu_custom_call.1} parent=5 // pred_region
        %s363 = ssub.s32 %s18, 2
        // Predicated region
        $region53: #{tpu_custom_call.1} parent=51 // pred_check
          %p364 = pneg %p141
        $region54: #{tpu_custom_call.1} parent=51 // pred_check_branch
          %366 = sbr.rel (%p364) target = $region56
        $region55: #{tpu_custom_call.1} parent=51 // pred_region
          %s367 = sand.u32 %s126, 1
          %s368 = scalar_lea.sflag [#allocation4], %s367
          %s369 = sand.u32 %s126, 1
          %s370 = smul.addr %s369, 8
          %s371 = scalar_lea.vmem [#allocation8], %s370
          %373 = dma.done %s368, 128
        $region56: #{tpu_custom_call.1} parent=51 // pred_fallthru
          _
      $region52: #{tpu_custom_call.1} parent=5 // pred_fallthru
        _
    $region6: #{tpu_custom_call.1} parent=1 // loop_footer
      %s22 = sadd.s32 1, %s18
    $region7: #{tpu_custom_call.1} parent=1 // loop_footer_branch
      %17 = sbr.rel target = $region3
    $region8: #{tpu_custom_call.1} parent=1 // loop_exit
      _
    %374 = vsyncpa [#allocation3], 1
    %s375 = scalar_lea.sflag [#allocation3], 1
    %376 = vsyncpa %s375, 1
    %377 = vsyncpa [#allocation6], 1
    %s378 = scalar_lea.sflag [#allocation6], 1
    %379 = vsyncpa %s378, 1
    %380 = vsyncpa [#allocation4], 1
    %s381 = scalar_lea.sflag [#allocation4], 1
    %382 = vsyncpa %s381, 1

</llo_original>
